<compile_context>
chip_gen: v5e
topology: v5e:2x2
jax: 0.10.0
libtpu: 0.0.40
codegen_flags: <defaults>
</compile_context>

<pallas_src>
import functools

import jax
import jax.numpy as jnp
from jax.experimental import pallas as pl
from jax.experimental.pallas import tpu as pltpu

_NEG_BIG = -3.0e38  # finite "-inf" for the additive max mask (avoids 0 * inf = NaN)


def _pooler_kernel(x_ref, pad_ref, end_ref, out_ref,
                   sum_acc, cnt_acc, end_acc, max_acc, first_acc):
    # Grid = (nh, ns); axis 0 tiles hidden ("parallel"), axis 1 tiles seq
    # ("arbitrary" reduction, innermost).  Accumulators live in f32 VMEM scratch
    # and are finalized into out_ref on the last seq step.
    s_idx = pl.program_id(1)
    ns = pl.num_programs(1)

    @pl.when(s_idx == 0)
    def _init():
        sum_acc[...] = jnp.zeros_like(sum_acc)
        cnt_acc[...] = jnp.zeros_like(cnt_acc)
        end_acc[...] = jnp.zeros_like(end_acc)
        max_acc[...] = jnp.full_like(max_acc, -jnp.inf)
        # seq block 0 contains the global first token.
        first_acc[...] = x_ref[0].astype(jnp.float32)

    x = x_ref[...].astype(jnp.float32)          # (TS, B, TH), f32 accumulation
    pad = pad_ref[...][:, :, None]              # (TS, B, 1), 1.0 where padding
    end = end_ref[...][:, :, None]              # (TS, B, 1), 1.0 at end token
    valid = 1.0 - pad                           # (TS, B, 1)

    # Hoist the lane-broadcasts once (JAX does not CSE broadcast_in_dim).
    valid3 = jnp.broadcast_to(valid, x.shape)                       # (TS, B, TH)
    end3 = jnp.broadcast_to(end, x.shape)                           # (TS, B, TH)
    negpad3 = jnp.broadcast_to(pad * jnp.float32(_NEG_BIG), x.shape)  # additive mask

    sum_acc[...] += jnp.sum(x * valid3, axis=0)                     # (B, TH)
    cnt_acc[...] += jnp.sum(valid, axis=0)                          # (B, 1)
    end_acc[...] += jnp.sum(x * end3, axis=0)                       # (B, TH)
    # Additive mask instead of where/-inf: one add, no compare+select pass.
    max_acc[...] = jnp.maximum(max_acc[...], jnp.max(x + negpad3, axis=0))

    @pl.when(s_idx == ns - 1)
    def _finalize():
        odt = out_ref.dtype
        # Single (B,1) reciprocal + broadcast multiply instead of a (B,TH) divide.
        inv_cnt = pl.reciprocal(cnt_acc[...], approx=False)
        out_ref[:, 0, :] = (sum_acc[...] * inv_cnt).astype(odt)     # masked mean
        out_ref[:, 1, :] = first_acc[...].astype(odt)               # first token
        out_ref[:, 2, :] = end_acc[...].astype(odt)                 # end-weighted sum
        out_ref[:, 3, :] = max_acc[...].astype(odt)                 # masked max


def _pick_tile(dim, preferred, align):
    """Largest multiple of `align` that divides `dim` and is <= preferred; else full dim."""
    if dim % align != 0:
        return dim
    t = max(align, (min(preferred, dim) // align) * align)
    while dim % t != 0:
        t -= align
    return max(t, align)


@functools.partial(jax.jit, static_argnames=("th_max", "x_block_bytes"))
def mean_start_end_max_pool(x, padding_mask, end_mask, *,
                            th_max=512, x_block_bytes=8 * 1024 * 1024):
    """x: (S, B, H) float (f32 or bf16); padding_mask, end_mask: (S, B) bool.

    Returns (B, 4*H) in x.dtype, matching
    torch.cat([mean, first, end_sum, max], dim=-1).
    """
    S, B, H = x.shape
    pad_f = padding_mask.astype(jnp.float32)
    end_f = end_mask.astype(jnp.float32)
    itemsize = jnp.dtype(x.dtype).itemsize

    # Hidden tile: multiple of 128 (lane-dense stores) when H allows, else full H.
    TH = _pick_tile(H, th_max, 128)
    # Seq tile sized so one x input buffer stays under x_block_bytes (double-buffered
    # by the pipeline => ~2x that in VMEM), multiple of 8 when S allows.
    ts_pref = max(8, int(x_block_bytes) // max(1, B * TH * itemsize))
    TS = _pick_tile(S, ts_pref, 8)

    nh = H // TH
    ns = S // TS
    grid = (nh, ns)

    flops = 5 * S * B * H
    bytes_accessed = int(S * B * H * itemsize + 2 * S * B * 4 + B * 4 * H * itemsize)
    cost = pl.CostEstimate(flops=flops, transcendentals=0,
                           bytes_accessed=bytes_accessed)

    out = pl.pallas_call(
        _pooler_kernel,
        out_shape=jax.ShapeDtypeStruct((B, 4, H), x.dtype),
        grid_spec=pltpu.PrefetchScalarGridSpec(
            num_scalar_prefetch=0,
            grid=grid,
            in_specs=[
                pl.BlockSpec((TS, B, TH), lambda h, s: (s, 0, h)),
                pl.BlockSpec((TS, B), lambda h, s: (s, 0)),
                pl.BlockSpec((TS, B), lambda h, s: (s, 0)),
            ],
            out_specs=pl.BlockSpec((B, 4, TH), lambda h, s: (0, 0, h)),
            scratch_shapes=[
                pltpu.VMEM((B, TH), jnp.float32),  # running sum
                pltpu.VMEM((B, 1), jnp.float32),   # valid count
                pltpu.VMEM((B, TH), jnp.float32),  # end-weighted sum
                pltpu.VMEM((B, TH), jnp.float32),  # running max
                pltpu.VMEM((B, TH), jnp.float32),  # first token
            ],
        ),
        compiler_params=pltpu.CompilerParams(
            dimension_semantics=("parallel", "arbitrary"),
            vmem_limit_bytes=48 * 1024 * 1024,
        ),
        cost_estimate=cost,
    )(x, pad_f, end_f)

    # (B, 4, H) -> (B, 4*H): contiguous reshape, matches torch.cat order.
    return out.reshape(B, 4 * H)


def _reference(x, padding_mask, end_mask):
    pad3 = padding_mask[:, :, None]
    valid = (~pad3).astype(jnp.float32)
    xf = x.astype(jnp.float32)
    mean = jnp.sum(xf * valid, axis=0) / jnp.sum(valid, axis=0)
    first = xf[0]
    end_sum = jnp.sum(xf * end_mask[:, :, None].astype(jnp.float32), axis=0)
    mx = jnp.max(jnp.where(pad3, -jnp.inf, xf), axis=0)
    return jnp.concatenate([mean, first, end_sum, mx], axis=-1).astype(x.dtype)


if __name__ == "__main__":
    S, B, H = 8, 2, 32
    key = jax.random.PRNGKey(0)
    kx, _ = jax.random.split(key)

    x = jax.random.normal(kx, (S, B, H), dtype=jnp.float32)

    # Deterministic sequence lengths per batch element.
    lengths = jnp.array([5, 7], dtype=jnp.int32)                 # (B,)
    pos = jnp.arange(S, dtype=jnp.int32)[:, None]                # (S, 1)
    padding_mask = pos >= lengths[None, :]                       # (S, B) True = padding
    end_mask = pos == (lengths[None, :] - 1)                     # (S, B) True = last token

    out = mean_start_end_max_pool(x, padding_mask, end_mask)
    jax.block_until_ready(out)

    ref = _reference(x, padding_mask, end_mask)
    assert out.shape == (B, 4 * H), out.shape
    assert jnp.allclose(out, ref, atol=1e-5, rtol=1e-5), "mismatch vs reference"

    print("KERNEL_OK")
</pallas_src>

<mosaic_0001>
module attributes {stable_mosaic.version = 11 : i64} {
  func.func @_pooler_kernel(%arg0: i32, %arg1: i32, %arg2: memref<8x2x32xf32, #tpu.memory_space<vmem>>, %arg3: memref<8x2xf32, #tpu.memory_space<vmem>>, %arg4: memref<8x2xf32, #tpu.memory_space<vmem>>, %arg5: memref<2x4x32xf32, #tpu.memory_space<vmem>>, %arg6: memref<2x32xf32, #tpu.memory_space<vmem>>, %arg7: memref<2x1xf32, #tpu.memory_space<vmem>>, %arg8: memref<2x32xf32, #tpu.memory_space<vmem>>, %arg9: memref<2x32xf32, #tpu.memory_space<vmem>>, %arg10: memref<2x32xf32, #tpu.memory_space<vmem>>) attributes {dimension_semantics = [#tpu.dimension_semantics<parallel>, #tpu.dimension_semantics<arbitrary>], iteration_bounds = array<i64: 1, 1>, scalar_prefetch = 0 : i64, scratch_operands = 5 : i64, tpu.core_type = #tpu.core_type<tc>, window_params = [{transform_indices = @transform_0, window_bounds = array<i64: 8, 2, 32>}, {transform_indices = @transform_1, window_bounds = array<i64: 8, 2>}, {transform_indices = @transform_2, window_bounds = array<i64: 8, 2>}, {transform_indices = @transform_3, window_bounds = array<i64: 2, 4, 32>}]} {
    %c0_i32 = arith.constant 0 : i32
    %0 = arith.cmpi eq, %arg1, %c0_i32 : i32
    %1 = arith.extui %0 : i1 to i32
    %c0_i32_0 = arith.constant 0 : i32
    %2 = arith.cmpi ne, %1, %c0_i32_0 : i32
    scf.if %2 {
      %cst_30 = arith.constant 0.000000e+00 : f32
      %40 = vector.broadcast %cst_30 : f32 to vector<2x32xf32>
      %c0_31 = arith.constant 0 : index
      %c0_32 = arith.constant 0 : index
      %41 = vector.load %arg6[%c0_31, %c0_32] : memref<2x32xf32, #tpu.memory_space<vmem>>, vector<2x32xf32>
      tpu.vector_store %arg6[%c0_31, %c0_32], %40 {strides = array<i32>} : memref<2x32xf32, #tpu.memory_space<vmem>>, vector<2x32xf32>,
      %cst_33 = arith.constant 0.000000e+00 : f32
      %42 = vector.broadcast %cst_33 : f32 to vector<2x1xf32>
      %c0_34 = arith.constant 0 : index
      %c0_35 = arith.constant 0 : index
      %43 = vector.load %arg7[%c0_34, %c0_35] : memref<2x1xf32, #tpu.memory_space<vmem>>, vector<2x1xf32>
      tpu.vector_store %arg7[%c0_34, %c0_35], %42 {strides = array<i32>} : memref<2x1xf32, #tpu.memory_space<vmem>>, vector<2x1xf32>,
      %cst_36 = arith.constant 0.000000e+00 : f32
      %44 = vector.broadcast %cst_36 : f32 to vector<2x32xf32>
      %c0_37 = arith.constant 0 : index
      %c0_38 = arith.constant 0 : index
      %45 = vector.load %arg8[%c0_37, %c0_38] : memref<2x32xf32, #tpu.memory_space<vmem>>, vector<2x32xf32>
      tpu.vector_store %arg8[%c0_37, %c0_38], %44 {strides = array<i32>} : memref<2x32xf32, #tpu.memory_space<vmem>>, vector<2x32xf32>,
      %cst_39 = arith.constant 0xFF800000 : f32
      %46 = vector.broadcast %cst_39 : f32 to vector<2x32xf32>
      %c0_40 = arith.constant 0 : index
      %c0_41 = arith.constant 0 : index
      %47 = vector.load %arg9[%c0_40, %c0_41] : memref<2x32xf32, #tpu.memory_space<vmem>>, vector<2x32xf32>
      tpu.vector_store %arg9[%c0_40, %c0_41], %46 {strides = array<i32>} : memref<2x32xf32, #tpu.memory_space<vmem>>, vector<2x32xf32>,
      %c0_42 = arith.constant 0 : index
      %c0_43 = arith.constant 0 : index
      %c0_44 = arith.constant 0 : index
      %48 = vector.load %arg2[%c0_42, %c0_43, %c0_44] : memref<8x2x32xf32, #tpu.memory_space<vmem>>, vector<1x2x32xf32>
      %49 = vector.shape_cast %48 : vector<1x2x32xf32> to vector<2x32xf32>
      %c0_45 = arith.constant 0 : index
      %c0_46 = arith.constant 0 : index
      %50 = vector.load %arg10[%c0_45, %c0_46] : memref<2x32xf32, #tpu.memory_space<vmem>>, vector<2x32xf32>
      tpu.vector_store %arg10[%c0_45, %c0_46], %49 {strides = array<i32>} : memref<2x32xf32, #tpu.memory_space<vmem>>, vector<2x32xf32>,
    } else {
    }
    %c0 = arith.constant 0 : index
    %c0_1 = arith.constant 0 : index
    %c0_2 = arith.constant 0 : index
    %3 = vector.load %arg2[%c0, %c0_1, %c0_2] : memref<8x2x32xf32, #tpu.memory_space<vmem>>, vector<8x2x32xf32>
    %c0_3 = arith.constant 0 : index
    %c0_4 = arith.constant 0 : index
    %4 = vector.load %arg3[%c0_3, %c0_4] : memref<8x2xf32, #tpu.memory_space<vmem>>, vector<8x2xf32>
    %5 = vector.shape_cast %4 : vector<8x2xf32> to vector<8x2x1xf32>
    %c0_5 = arith.constant 0 : index
    %c0_6 = arith.constant 0 : index
    %6 = vector.load %arg4[%c0_5, %c0_6] : memref<8x2xf32, #tpu.memory_space<vmem>>, vector<8x2xf32>
    %7 = vector.shape_cast %6 : vector<8x2xf32> to vector<8x2x1xf32>
    %cst = arith.constant 1.000000e+00 : f32
    %8 = vector.broadcast %cst : f32 to vector<8x2x1xf32>
    %9 = arith.subf %8, %5 : vector<8x2x1xf32>
    %10 = vector.shape_cast %9 : vector<8x2x1xf32> to vector<8x2x1xf32>
    %11 = vector.broadcast %10 : vector<8x2x1xf32> to vector<8x2x32xf32>
    %12 = vector.shape_cast %7 : vector<8x2x1xf32> to vector<8x2x1xf32>
    %13 = vector.broadcast %12 : vector<8x2x1xf32> to vector<8x2x32xf32>
    %cst_7 = arith.constant -3.000000e+38 : f32
    %14 = vector.broadcast %cst_7 : f32 to vector<8x2x1xf32>
    %15 = arith.mulf %5, %14 : vector<8x2x1xf32>
    %16 = vector.shape_cast %15 : vector<8x2x1xf32> to vector<8x2x1xf32>
    %17 = vector.broadcast %16 : vector<8x2x1xf32> to vector<8x2x32xf32>
    %c0_8 = arith.constant 0 : index
    %c0_9 = arith.constant 0 : index
    %18 = vector.load %arg6[%c0_8, %c0_9] : memref<2x32xf32, #tpu.memory_space<vmem>>, vector<2x32xf32>
    %19 = arith.mulf %3, %11 : vector<8x2x32xf32>
    %cst_10 = arith.constant dense<0.000000e+00> : vector<2x32xf32>
    %20 = vector.multi_reduction <add>, %19, %cst_10 [0] : vector<8x2x32xf32> to vector<2x32xf32>
    %21 = arith.addf %18, %20 : vector<2x32xf32>
    %c0_11 = arith.constant 0 : index
    %c0_12 = arith.constant 0 : index
    %22 = vector.load %arg6[%c0_11, %c0_12] : memref<2x32xf32, #tpu.memory_space<vmem>>, vector<2x32xf32>
    tpu.vector_store %arg6[%c0_11, %c0_12], %21 {strides = array<i32>} : memref<2x32xf32, #tpu.memory_space<vmem>>, vector<2x32xf32>,
    %c0_13 = arith.constant 0 : index
    %c0_14 = arith.constant 0 : index
    %23 = vector.load %arg7[%c0_13, %c0_14] : memref<2x1xf32, #tpu.memory_space<vmem>>, vector<2x1xf32>
    %cst_15 = arith.constant dense<0.000000e+00> : vector<2x1xf32>
    %24 = vector.multi_reduction <add>, %9, %cst_15 [0] : vector<8x2x1xf32> to vector<2x1xf32>
    %25 = arith.addf %23, %24 : vector<2x1xf32>
    %c0_16 = arith.constant 0 : index
    %c0_17 = arith.constant 0 : index
    %26 = vector.load %arg7[%c0_16, %c0_17] : memref<2x1xf32, #tpu.memory_space<vmem>>, vector<2x1xf32>
    tpu.vector_store %arg7[%c0_16, %c0_17], %25 {strides = array<i32>} : memref<2x1xf32, #tpu.memory_space<vmem>>, vector<2x1xf32>,
    %c0_18 = arith.constant 0 : index
    %c0_19 = arith.constant 0 : index
    %27 = vector.load %arg8[%c0_18, %c0_19] : memref<2x32xf32, #tpu.memory_space<vmem>>, vector<2x32xf32>
    %28 = arith.mulf %3, %13 : vector<8x2x32xf32>
    %cst_20 = arith.constant dense<0.000000e+00> : vector<2x32xf32>
    %29 = vector.multi_reduction <add>, %28, %cst_20 [0] : vector<8x2x32xf32> to vector<2x32xf32>
    %30 = arith.addf %27, %29 : vector<2x32xf32>
    %c0_21 = arith.constant 0 : index
    %c0_22 = arith.constant 0 : index
    %31 = vector.load %arg8[%c0_21, %c0_22] : memref<2x32xf32, #tpu.memory_space<vmem>>, vector<2x32xf32>
    tpu.vector_store %arg8[%c0_21, %c0_22], %30 {strides = array<i32>} : memref<2x32xf32, #tpu.memory_space<vmem>>, vector<2x32xf32>,
    %c0_23 = arith.constant 0 : index
    %c0_24 = arith.constant 0 : index
    %32 = vector.load %arg9[%c0_23, %c0_24] : memref<2x32xf32, #tpu.memory_space<vmem>>, vector<2x32xf32>
    %33 = arith.addf %3, %17 : vector<8x2x32xf32>
    %cst_25 = arith.constant dense<0xFF800000> : vector<2x32xf32>
    %34 = vector.multi_reduction <maximumf>, %33, %cst_25 [0] : vector<8x2x32xf32> to vector<2x32xf32>
    %35 = arith.maximumf %32, %34 : vector<2x32xf32>
    %c0_26 = arith.constant 0 : index
    %c0_27 = arith.constant 0 : index
    %36 = vector.load %arg9[%c0_26, %c0_27] : memref<2x32xf32, #tpu.memory_space<vmem>>, vector<2x32xf32>
    tpu.vector_store %arg9[%c0_26, %c0_27], %35 {strides = array<i32>} : memref<2x32xf32, #tpu.memory_space<vmem>>, vector<2x32xf32>,
    %c0_i32_28 = arith.constant 0 : i32
    %37 = arith.cmpi eq, %arg1, %c0_i32_28 : i32
    %38 = arith.extui %37 : i1 to i32
    %c0_i32_29 = arith.constant 0 : i32
    %39 = arith.cmpi ne, %38, %c0_i32_29 : i32
    scf.if %39 {
      %c0_30 = arith.constant 0 : index
      %c0_31 = arith.constant 0 : index
      %40 = vector.load %arg7[%c0_30, %c0_31] : memref<2x1xf32, #tpu.memory_space<vmem>>, vector<2x1xf32>
      %41 = tpu.reciprocal %40 : vector<2x1xf32> -> vector<2x1xf32>
      %c0_32 = arith.constant 0 : index
      %c0_33 = arith.constant 0 : index
      %42 = vector.load %arg6[%c0_32, %c0_33] : memref<2x32xf32, #tpu.memory_space<vmem>>, vector<2x32xf32>
      %43 = vector.broadcast %41 : vector<2x1xf32> to vector<2x32xf32>
      %44 = arith.mulf %42, %43 : vector<2x32xf32>
      %c0_34 = arith.constant 0 : index
      %c0_35 = arith.constant 0 : index
      %c0_36 = arith.constant 0 : index
      %45 = vector.load %arg5[%c0_34, %c0_35, %c0_36] : memref<2x4x32xf32, #tpu.memory_space<vmem>>, vector<2x1x32xf32>
      %46 = vector.shape_cast %45 : vector<2x1x32xf32> to vector<2x32xf32>
      %47 = vector.shape_cast %44 : vector<2x32xf32> to vector<2x1x32xf32>
      tpu.vector_store %arg5[%c0_34, %c0_35, %c0_36], %47 {strides = array<i32>} : memref<2x4x32xf32, #tpu.memory_space<vmem>>, vector<2x1x32xf32>,
      %c0_37 = arith.constant 0 : index
      %c0_38 = arith.constant 0 : index
      %48 = vector.load %arg10[%c0_37, %c0_38] : memref<2x32xf32, #tpu.memory_space<vmem>>, vector<2x32xf32>
      %c0_39 = arith.constant 0 : index
      %c1 = arith.constant 1 : index
      %c0_40 = arith.constant 0 : index
      %49 = vector.load %arg5[%c0_39, %c1, %c0_40] : memref<2x4x32xf32, #tpu.memory_space<vmem>>, vector<2x1x32xf32>
      %50 = vector.shape_cast %49 : vector<2x1x32xf32> to vector<2x32xf32>
      %51 = vector.shape_cast %48 : vector<2x32xf32> to vector<2x1x32xf32>
      tpu.vector_store %arg5[%c0_39, %c1, %c0_40], %51 {strides = array<i32>} : memref<2x4x32xf32, #tpu.memory_space<vmem>>, vector<2x1x32xf32>,
      %c0_41 = arith.constant 0 : index
      %c0_42 = arith.constant 0 : index
      %52 = vector.load %arg8[%c0_41, %c0_42] : memref<2x32xf32, #tpu.memory_space<vmem>>, vector<2x32xf32>
      %c0_43 = arith.constant 0 : index
      %c2 = arith.constant 2 : index
      %c0_44 = arith.constant 0 : index
      %53 = vector.load %arg5[%c0_43, %c2, %c0_44] : memref<2x4x32xf32, #tpu.memory_space<vmem>>, vector<2x1x32xf32>
      %54 = vector.shape_cast %53 : vector<2x1x32xf32> to vector<2x32xf32>
      %55 = vector.shape_cast %52 : vector<2x32xf32> to vector<2x1x32xf32>
      tpu.vector_store %arg5[%c0_43, %c2, %c0_44], %55 {strides = array<i32>} : memref<2x4x32xf32, #tpu.memory_space<vmem>>, vector<2x1x32xf32>,
      %c0_45 = arith.constant 0 : index
      %c0_46 = arith.constant 0 : index
      %56 = vector.load %arg9[%c0_45, %c0_46] : memref<2x32xf32, #tpu.memory_space<vmem>>, vector<2x32xf32>
      %c0_47 = arith.constant 0 : index
      %c3 = arith.constant 3 : index
      %c0_48 = arith.constant 0 : index
      %57 = vector.load %arg5[%c0_47, %c3, %c0_48] : memref<2x4x32xf32, #tpu.memory_space<vmem>>, vector<2x1x32xf32>
      %58 = vector.shape_cast %57 : vector<2x1x32xf32> to vector<2x32xf32>
      %59 = vector.shape_cast %56 : vector<2x32xf32> to vector<2x1x32xf32>
      tpu.vector_store %arg5[%c0_47, %c3, %c0_48], %59 {strides = array<i32>} : memref<2x4x32xf32, #tpu.memory_space<vmem>>, vector<2x1x32xf32>,
    } else {
    }
    return
  }
  func.func @transform_0(%arg0: i32, %arg1: i32) -> (i32, i32, i32) {
    %c0_i32 = arith.constant 0 : i32
    %c0_i32_0 = arith.constant 0 : i32
    return %arg1, %c0_i32, %arg0 : i32, i32, i32
  }
  func.func @transform_1(%arg0: i32, %arg1: i32) -> (i32, i32) {
    %c0_i32 = arith.constant 0 : i32
    %c0_i32_0 = arith.constant 0 : i32
    return %arg1, %c0_i32 : i32, i32
  }
  func.func @transform_2(%arg0: i32, %arg1: i32) -> (i32, i32) {
    %c0_i32 = arith.constant 0 : i32
    %c0_i32_0 = arith.constant 0 : i32
    return %arg1, %c0_i32 : i32, i32
  }
  func.func @transform_3(%arg0: i32, %arg1: i32) -> (i32, i32, i32) {
    %c0_i32 = arith.constant 0 : i32
    %c0_i32_0 = arith.constant 0 : i32
    %c0_i32_1 = arith.constant 0 : i32
    return %c0_i32, %c0_i32_0, %arg0 : i32, i32, i32
  }
}

</mosaic_0001>

<llo_original>
// kernel: mean_start_end_max_pool.1
$region0: #{mean_start_end_max_pool.1}
  #allocation0 [shape = 'u32[]', space=smem, size = 0x4, offset = 0x4, fixed_abs, tag = 'smem constant byte address 0x4 - core index']
  #allocation1 [shape = 'u32[72,128]{1,0:T(1,128)}', space=vmem, size = 0x9000, scoped, tag = 'internal scratch']
  #allocation2 [shape = 'f32[2,32]{1,0:T(2,128)}', space=vmem, size = 0x400, scoped, tag = 'scratch operand']
  #allocation3 [shape = 'f32[2,1]{1,0:T(2,128)}', space=vmem, size = 0x400, scoped, tag = 'scratch operand']
  #allocation4 [shape = 'f32[2,32]{1,0:T(2,128)}', space=vmem, size = 0x400, scoped, tag = 'scratch operand']
  #allocation5 [shape = 'f32[2,32]{1,0:T(2,128)}', space=vmem, size = 0x400, scoped, tag = 'scratch operand']
  #allocation6 [shape = 'f32[2,32]{1,0:T(2,128)}', space=vmem, size = 0x400, scoped, tag = 'scratch operand']
  %s0 = inlined_call_operand.vmem [shape: f32[8,2,32], index: 0, kind: input, shape index: {}]
  %s1 = inlined_call_operand.vmem [shape: f32[8,2], index: 1, kind: input, shape index: {}]
  %s2 = inlined_call_operand.vmem [shape: f32[8,2], index: 2, kind: input, shape index: {}]
  %s3 = inlined_call_operand.vmem [shape: f32[2,4,32], index: 3, kind: output, shape index: {}]
  %s4 = sld [smem:[#allocation0]]
  $region30: #{mean_start_end_max_pool.1} parent=0
    _
  %s6 = ssub.s32 1, %s4
  %s7 = scalar_select 0, %s6, %s4
  // Predicated region
  $region2: #{mean_start_end_max_pool.1} parent=0 // pred_check
    _
  $region3: #{mean_start_end_max_pool.1} parent=0 // pred_check_branch
    %9 = sbr.rel (0) target = $region5
  $region4: #{mean_start_end_max_pool.1} parent=0 // pred_region
    _
  $region5: #{mean_start_end_max_pool.1} parent=0 // pred_fallthru
    _
  // Predicated region
  $region6: #{mean_start_end_max_pool.1} parent=0 // pred_check
    _
  $region7: #{mean_start_end_max_pool.1} parent=0 // pred_check_branch
    %11 = sbr.rel (0) target = $region9
  $region8: #{mean_start_end_max_pool.1} parent=0 // pred_region
    _
  $region9: #{mean_start_end_max_pool.1} parent=0 // pred_fallthru
    _
  // Predicated region
  $region10: #{mean_start_end_max_pool.1} parent=0 // pred_check
    _
  $region11: #{mean_start_end_max_pool.1} parent=0 // pred_check_branch
    %13 = sbr.rel (0) target = $region13
  $region12: #{mean_start_end_max_pool.1} parent=0 // pred_region
    _
  $region13: #{mean_start_end_max_pool.1} parent=0 // pred_fallthru
    _
  %p14 = scmp.eq.s32.totalorder 0, 0
  // Predicated region
  $region14: #{mean_start_end_max_pool.1} parent=0 // pred_check
    %p15 = pneg %p14
  $region15: #{mean_start_end_max_pool.1} parent=0 // pred_check_branch
    %17 = sbr.rel (%p15) target = $region17
  $region16: #{mean_start_end_max_pool.1} parent=0 // pred_region
    %vm18 = vcmask 254976
    %19 = vst.msk [vmem:[#allocation2] sm:$0x3] %vm18, 0.0
    %vm20 = vcmask 1024
    %21 = vst.msk [vmem:[#allocation3] sm:$0x3] %vm20, 0.0
    %22 = vst.msk [vmem:[#allocation4] sm:$0x3] %vm18, 0.0
    %23 = vst.msk [vmem:[#allocation5] sm:$0x3] %vm18, -inf
    %v24 = vld [vmem:[%s0] sm:$0x3]
    %25 = vst.msk [vmem:[#allocation6] sm:$0x3] %vm18, %v24
  $region17: #{mean_start_end_max_pool.1} parent=0 // pred_fallthru
    _
  %v26 = vld [vmem:[%s0] sm:$0x3]
  %v27 = vld [vmem:[%s0 + $0x2] sm:$0x3]
  %v28 = vld [vmem:[%s0 + $0x4] sm:$0x3]
  %v29 = vld [vmem:[%s0 + $0x6] sm:$0x3]
  %v30 = vld [vmem:[%s0 + $0x8] sm:$0x3]
  %v31 = vld [vmem:[%s0 + $0xa] sm:$0x3]
  %v32 = vld [vmem:[%s0 + $0xc] sm:$0x3]
  %v33 = vld [vmem:[%s0 + $0xe] sm:$0x3]
  %v34 = vld [vmem:[%s1] sm:$0xff]
  %v35 = vperm.slane %v34, 0
  %v36 = vlaneseq
  %v37 = vshrl.u32 %v36, 7
  %39 = vset.pattern.permute.xlu0 %v37
  %40 = vperm.xlu0 %39, %v35
  %v41 = vpop.permute.xlu0 %40
  %v42 = vperm.slane %v34, 1
  %v43 = vlaneseq
  %v44 = vshrl.u32 %v43, 7
  %46 = vset.pattern.permute.xlu0 %v44
  %47 = vperm.xlu0 %46, %v42
  %v48 = vpop.permute.xlu0 %47
  %v49 = vperm.slane %v34, 2
  %v50 = vlaneseq
  %v51 = vshrl.u32 %v50, 7
  %53 = vset.pattern.permute.xlu0 %v51
  %54 = vperm.xlu0 %53, %v49
  %v55 = vpop.permute.xlu0 %54
  %v56 = vperm.slane %v34, 3
  %v57 = vlaneseq
  %v58 = vshrl.u32 %v57, 7
  %60 = vset.pattern.permute.xlu0 %v58
  %61 = vperm.xlu0 %60, %v56
  %v62 = vpop.permute.xlu0 %61
  %v63 = vperm.slane %v34, 4
  %v64 = vlaneseq
  %v65 = vshrl.u32 %v64, 7
  %67 = vset.pattern.permute.xlu0 %v65
  %68 = vperm.xlu0 %67, %v63
  %v69 = vpop.permute.xlu0 %68
  %v70 = vperm.slane %v34, 5
  %v71 = vlaneseq
  %v72 = vshrl.u32 %v71, 7
  %74 = vset.pattern.permute.xlu0 %v72
  %75 = vperm.xlu0 %74, %v70
  %v76 = vpop.permute.xlu0 %75
  %v77 = vperm.slane %v34, 6
  %v78 = vlaneseq
  %v79 = vshrl.u32 %v78, 7
  %81 = vset.pattern.permute.xlu0 %v79
  %82 = vperm.xlu0 %81, %v77
  %v83 = vpop.permute.xlu0 %82
  %v84 = vperm.slane %v34, 7
  %v85 = vlaneseq
  %v86 = vshrl.u32 %v85, 7
  %88 = vset.pattern.permute.xlu0 %v86
  %89 = vperm.xlu0 %88, %v84
  %v90 = vpop.permute.xlu0 %89
  %v91 = vld [vmem:[%s2] sm:$0xff]
  %v92 = vperm.slane %v91, 0
  %v93 = vlaneseq
  %v94 = vshrl.u32 %v93, 7
  %96 = vset.pattern.permute.xlu0 %v94
  %97 = vperm.xlu0 %96, %v92
  %v98 = vpop.permute.xlu0 %97
  %v99 = vperm.slane %v91, 1
  %v100 = vlaneseq
  %v101 = vshrl.u32 %v100, 7
  %103 = vset.pattern.permute.xlu0 %v101
  %104 = vperm.xlu0 %103, %v99
  %v105 = vpop.permute.xlu0 %104
  %v106 = vperm.slane %v91, 2
  %v107 = vlaneseq
  %v108 = vshrl.u32 %v107, 7
  %110 = vset.pattern.permute.xlu0 %v108
  %111 = vperm.xlu0 %110, %v106
  %v112 = vpop.permute.xlu0 %111
  %v113 = vperm.slane %v91, 3
  %v114 = vlaneseq
  %v115 = vshrl.u32 %v114, 7
  %117 = vset.pattern.permute.xlu0 %v115
  %118 = vperm.xlu0 %117, %v113
  %v119 = vpop.permute.xlu0 %118
  %v120 = vperm.slane %v91, 4
  %v121 = vlaneseq
  %v122 = vshrl.u32 %v121, 7
  %124 = vset.pattern.permute.xlu0 %v122
  %125 = vperm.xlu0 %124, %v120
  %v126 = vpop.permute.xlu0 %125
  %v127 = vperm.slane %v91, 5
  %v128 = vlaneseq
  %v129 = vshrl.u32 %v128, 7
  %131 = vset.pattern.permute.xlu0 %v129
  %132 = vperm.xlu0 %131, %v127
  %v133 = vpop.permute.xlu0 %132
  %v134 = vperm.slane %v91, 6
  %v135 = vlaneseq
  %v136 = vshrl.u32 %v135, 7
  %138 = vset.pattern.permute.xlu0 %v136
  %139 = vperm.xlu0 %138, %v134
  %v140 = vpop.permute.xlu0 %139
  %v141 = vperm.slane %v91, 7
  %v142 = vlaneseq
  %v143 = vshrl.u32 %v142, 7
  %145 = vset.pattern.permute.xlu0 %v143
  %146 = vperm.xlu0 %145, %v141
  %v147 = vpop.permute.xlu0 %146
  %v148 = vsub.f32 1.0, %v41
  %v149 = vsub.f32 1.0, %v48
  %v150 = vsub.f32 1.0, %v55
  %v151 = vsub.f32 1.0, %v62
  %v152 = vsub.f32 1.0, %v69
  %v153 = vsub.f32 1.0, %v76
  %v154 = vsub.f32 1.0, %v83
  %v155 = vsub.f32 1.0, %v90
  %v156 = vmul.f32 %v41, -3e+38
  %v157 = vmul.f32 %v48, -3e+38
  %v158 = vmul.f32 %v55, -3e+38
  %v159 = vmul.f32 %v62, -3e+38
  %v160 = vmul.f32 %v69, -3e+38
  %v161 = vmul.f32 %v76, -3e+38
  %v162 = vmul.f32 %v83, -3e+38
  %v163 = vmul.f32 %v90, -3e+38
  %v164 = vld [vmem:[#allocation2] sm:$0x3]
  %v165 = vmul.f32 %v26, %v148
  %v166 = vmul.f32 %v27, %v149
  %v167 = vmul.f32 %v28, %v150
  %v168 = vmul.f32 %v29, %v151
  %v169 = vmul.f32 %v30, %v152
  %v170 = vmul.f32 %v31, %v153
  %v171 = vmul.f32 %v32, %v154
  %v172 = vmul.f32 %v33, %v155
  %vm173 = vcmask 254976
  %v174 = vsel %vm173, %v165, 0.0
  %v175 = vsel %vm173, %v166, 0.0
  %v176 = vadd.f32 %v174, %v175
  %v177 = vsel %vm173, %v167, 0.0
  %v178 = vadd.f32 %v176, %v177
  %v179 = vsel %vm173, %v168, 0.0
  %v180 = vadd.f32 %v178, %v179
  %v181 = vsel %vm173, %v169, 0.0
  %v182 = vadd.f32 %v180, %v181
  %v183 = vsel %vm173, %v170, 0.0
  %v184 = vadd.f32 %v182, %v183
  %v185 = vsel %vm173, %v171, 0.0
  %v186 = vadd.f32 %v184, %v185
  %v187 = vsel %vm173, %v172, 0.0
  %v188 = vadd.f32 %v186, %v187
  %v189 = vadd.f32 %v164, %v188
  %190 = vst.msk [vmem:[#allocation2] sm:$0x3] %vm173, %v189
  %v191 = vld [vmem:[#allocation3] sm:$0x3]
  %vm192 = vcmask 1041408
  %v193 = vsel %vm192, %v148, 0.0
  %v194 = vsel %vm192, %v149, 0.0
  %v195 = vadd.f32 %v193, %v194
  %v196 = vsel %vm192, %v150, 0.0
  %v197 = vadd.f32 %v195, %v196
  %v198 = vsel %vm192, %v151, 0.0
  %v199 = vadd.f32 %v197, %v198
  %v200 = vsel %vm192, %v152, 0.0
  %v201 = vadd.f32 %v199, %v200
  %v202 = vsel %vm192, %v153, 0.0
  %v203 = vadd.f32 %v201, %v202
  %v204 = vsel %vm192, %v154, 0.0
  %v205 = vadd.f32 %v203, %v204
  %v206 = vsel %vm192, %v155, 0.0
  %v207 = vadd.f32 %v205, %v206
  %v208 = vadd.f32 %v191, %v207
  %vm209 = vcmask 1024
  %210 = vst.msk [vmem:[#allocation3] sm:$0x3] %vm209, %v208
  %v211 = vld [vmem:[#allocation4] sm:$0x3]
  %v212 = vmul.f32 %v26, %v98
  %v213 = vmul.f32 %v27, %v105
  %v214 = vmul.f32 %v28, %v112
  %v215 = vmul.f32 %v29, %v119
  %v216 = vmul.f32 %v30, %v126
  %v217 = vmul.f32 %v31, %v133
  %v218 = vmul.f32 %v32, %v140
  %v219 = vmul.f32 %v33, %v147
  %v220 = vsel %vm173, %v212, 0.0
  %v221 = vsel %vm173, %v213, 0.0
  %v222 = vadd.f32 %v220, %v221
  %v223 = vsel %vm173, %v214, 0.0
  %v224 = vadd.f32 %v222, %v223
  %v225 = vsel %vm173, %v215, 0.0
  %v226 = vadd.f32 %v224, %v225
  %v227 = vsel %vm173, %v216, 0.0
  %v228 = vadd.f32 %v226, %v227
  %v229 = vsel %vm173, %v217, 0.0
  %v230 = vadd.f32 %v228, %v229
  %v231 = vsel %vm173, %v218, 0.0
  %v232 = vadd.f32 %v230, %v231
  %v233 = vsel %vm173, %v219, 0.0
  %v234 = vadd.f32 %v232, %v233
  %v235 = vadd.f32 %v211, %v234
  %236 = vst.msk [vmem:[#allocation4] sm:$0x3] %vm173, %v235
  %v237 = vld [vmem:[#allocation5] sm:$0x3]
  %v238 = vadd.f32 %v26, %v156
  %v239 = vadd.f32 %v27, %v157
  %v240 = vadd.f32 %v28, %v158
  %v241 = vadd.f32 %v29, %v159
  %v242 = vadd.f32 %v30, %v160
  %v243 = vadd.f32 %v31, %v161
  %v244 = vadd.f32 %v32, %v162
  %v245 = vadd.f32 %v33, %v163
  %v246 = vsel %vm173, %v238, -inf
  %v247 = vsel %vm173, %v239, -inf
  %v248 = vsel %vm173, %v240, -inf
  %v249 = vsel %vm173, %v241, -inf
  %v250 = vsel %vm173, %v242, -inf
  %v251 = vmax.f32 %v246, %v250
  %v252 = vsel %vm173, %v243, -inf
  %v253 = vmax.f32 %v247, %v252
  %v254 = vsel %vm173, %v244, -inf
  %v255 = vmax.f32 %v248, %v254
  %v256 = vsel %vm173, %v245, -inf
  %v257 = vmax.f32 %v249, %v256
  %v258 = vmax.f32 %v251, %v253
  %v259 = vmax.f32 %v255, %v257
  %v260 = vmax.f32 %v258, %v259
  %v261 = vmax.f32 %v237, %v260
  %262 = vst.msk [vmem:[#allocation5] sm:$0x3] %vm173, %v261
  // Predicated region
  $region18: #{mean_start_end_max_pool.1} parent=0 // pred_check
    %p263 = pneg %p14
  $region19: #{mean_start_end_max_pool.1} parent=0 // pred_check_branch
    %265 = sbr.rel (%p263) target = $region21
  $region20: #{mean_start_end_max_pool.1} parent=0 // pred_region
    %v266 = vld [vmem:[#allocation3] sm:$0x3]
    %v267 = vrcp.pop %v266
    %v268 = vmul.f32 %v266, %v267
    %v269 = vsub.f32 1.0, %v268
    %v270 = vmul.f32 %v267, %v269
    %v271 = vadd.f32 %v267, %v270
    %vm272 = vweird.f32 %v266
    %vm273 = vweird.f32 %v267
    %vm274 = vmor %vm272, %vm273
    %v275 = vsel %vm274, %v267, %v271
    %v276 = vand.u32 2147483647, %v266
    %vm277 = vcmp.eq.f32.partialorder %v276, 8.507059e+37
    %v278 = vand.u32 %v266, 2147483648
    %v279 = vor.u32 1.1754944e-38, %v278
    %v280 = vsel %vm277, %v279, %v275
    %v281 = vld [vmem:[#allocation2] sm:$0x3]
    %283 = vset.pattern.permute.xlu0 0
    %284 = vperm.xlu0 %283, %v280
    %v285 = vpop.permute.xlu0 %284
    %v287 = vmul.f32 %v281, %v285
    %v289 = vrot.slane %v287, 1
    %vm291 = vcmask 253952
    %292 = vst.msk [vmem:[%s3] sm:$0x1] %vm291, %v287
    %293 = vst.msk [vmem:[%s3 + $0x4] sm:$0x1] %vm291, %v289
    %v294 = vld [vmem:[#allocation6] sm:$0x3]
    %v296 = vrot.slane %v294, 1
    %298 = vst.msk [vmem:[%s3 + $0x1] sm:$0x1] %vm291, %v294
    %299 = vst.msk [vmem:[%s3 + $0x5] sm:$0x1] %vm291, %v296
    %v300 = vld [vmem:[#allocation4] sm:$0x3]
    %v302 = vrot.slane %v300, 1
    %304 = vst.msk [vmem:[%s3 + $0x2] sm:$0x1] %vm291, %v300
    %305 = vst.msk [vmem:[%s3 + $0x6] sm:$0x1] %vm291, %v302
    %v306 = vld [vmem:[#allocation5] sm:$0x3]
    %v308 = vrot.slane %v306, 1
    %310 = vst.msk [vmem:[%s3 + $0x3] sm:$0x1] %vm291, %v306
    %311 = vst.msk [vmem:[%s3 + $0x7] sm:$0x1] %vm291, %v308
  $region21: #{mean_start_end_max_pool.1} parent=0 // pred_fallthru
    _
  // Predicated region
  $region22: #{mean_start_end_max_pool.1} parent=0 // pred_check
    _
  $region23: #{mean_start_end_max_pool.1} parent=0 // pred_check_branch
    %313 = sbr.rel (0) target = $region25
  $region24: #{mean_start_end_max_pool.1} parent=0 // pred_region
    _
  $region25: #{mean_start_end_max_pool.1} parent=0 // pred_fallthru
    _
  // Predicated region
  $region26: #{mean_start_end_max_pool.1} parent=0 // pred_check
    _
  $region27: #{mean_start_end_max_pool.1} parent=0 // pred_check_branch
    %315 = sbr.rel (0) target = $region29
  $region28: #{mean_start_end_max_pool.1} parent=0 // pred_region
    _
  $region29: #{mean_start_end_max_pool.1} parent=0 // pred_fallthru
    _

</llo_original>
